<compile_context>
chip_gen: v5e
topology: v5e:2x2
jax: 0.10.0
libtpu: 0.0.40
codegen_flags: <defaults>
</compile_context>

<pallas_src>
import functools
import math

import jax
import jax.numpy as jnp
from jax import lax
from jax.experimental import pallas as pl
from jax.experimental.pallas import tpu as pltpu


def _pick_tile(n, candidates):
    """Largest candidate that divides n, else the full extent."""
    for c in candidates:
        if n % c == 0:
            return c
    return n


# ---------------------------------------------------------------------------
# Tiled matmul kernel: a (M,K) @ b_t (N,K)^T -> (M,N).
# Weights stay in (out, in) layout; contraction is on both last dims, so there
# is no runtime weight transpose in HBM.
# ---------------------------------------------------------------------------
def _matmul_nt_kernel(a_ref, b_ref, o_ref, acc_ref):
    @pl.when(pl.program_id(2) == 0)
    def _():
        acc_ref[...] = jnp.zeros_like(acc_ref)

    acc_ref[...] += lax.dot_general(
        a_ref[...], b_ref[...],
        dimension_numbers=(((1,), (1,)), ((), ())),
        preferred_element_type=jnp.float32)

    @pl.when(pl.program_id(2) == pl.num_programs(2) - 1)
    def _():
        o_ref[...] = acc_ref[...].astype(o_ref.dtype)


def matmul_nt(a, b_t):
    """a: (M, K), b_t: (N, K)  ->  a @ b_t.T : (M, N)."""
    M, K = a.shape
    N, K2 = b_t.shape
    assert K == K2
    tm = _pick_tile(M, (256, 128, 64, 32, 16, 8))
    tn = _pick_tile(N, (512, 256, 128))          # lane-dense output blocks
    tk = _pick_tile(K, (512, 256, 128))
    grid = (M // tm, N // tn, K // tk)

    return pl.pallas_call(
        _matmul_nt_kernel,
        out_shape=jax.ShapeDtypeStruct((M, N), a.dtype),
        grid_spec=pltpu.PrefetchScalarGridSpec(
            num_scalar_prefetch=0,
            grid=grid,
            in_specs=[
                pl.BlockSpec((tm, tk), lambda i, j, k: (i, k)),
                pl.BlockSpec((tn, tk), lambda i, j, k: (j, k)),
            ],
            out_specs=pl.BlockSpec((tm, tn), lambda i, j, k: (i, j)),
            scratch_shapes=[pltpu.VMEM((tm, tn), jnp.float32)],
        ),
        compiler_params=pltpu.CompilerParams(
            dimension_semantics=("parallel", "parallel", "arbitrary")),
    )(a, b_t)


# ---------------------------------------------------------------------------
# QKV prep kernel: per-head RMSNorm + rotary (half layout) + scale folding.
# Runs ONCE over the data (hoisted out of the attention inner loop) and emits
# bf16 Q/K/V laid out as (B*S, heads*head_dim) so the flash kernel can read
# row/column blocks directly.
# ---------------------------------------------------------------------------
def _qkv_prep_kernel(q_ref, k_ref, v_ref, qw_ref, kw_ref, cos_ref, sin_ref,
                     qo_ref, ko_ref, vo_ref, *, eps, use_qk_norm, scale):
    half = cos_ref.shape[-1]

    def norm_rope(x_raw, w_ref):
        x = x_raw.astype(jnp.float32)
        if use_qk_norm:
            ms = jnp.mean(x * x, axis=-1, keepdims=True)
            x = x * lax.rsqrt(ms + eps) * w_ref[...]
        x1 = x[:, :half]
        x2 = x[:, half:]
        c = cos_ref[...]
        s = sin_ref[...]
        # half-layout rotary: [x1*c - x2*s, x2*c + x1*s]
        return jnp.concatenate([x1 * c - x2 * s, x2 * c + x1 * s], axis=-1)

    qo_ref[...] = (norm_rope(q_ref[...], qw_ref) * scale).astype(qo_ref.dtype)
    ko_ref[...] = norm_rope(k_ref[...], kw_ref).astype(ko_ref.dtype)
    vo_ref[...] = v_ref[...].astype(vo_ref.dtype)


def qkv_prep(qkv, q_norm_w, k_norm_w, cos, sin, *, B, S, n_head, n_local_heads,
             head_dim, eps, use_qk_norm, scale, out_dtype=jnp.bfloat16):
    D = head_dim
    ts = _pick_tile(S, (256, 128, 64, 32, 16, 8))
    ns = S // ts
    dim = n_head * D
    kv_size = n_local_heads * D

    q_map = lambda b, h, si: (b * ns + si, h)
    k_map = lambda b, h, si: (b * ns + si, n_head + h)
    v_map = lambda b, h, si: (b * ns + si, n_head + n_local_heads + h)
    w_map = lambda b, h, si: (0, 0)
    t_map = lambda b, h, si: (si, 0)
    o_map = lambda b, h, si: (b * ns + si, h)

    kernel = functools.partial(_qkv_prep_kernel, eps=eps,
                               use_qk_norm=use_qk_norm, scale=scale)
    return pl.pallas_call(
        kernel,
        out_shape=(
            jax.ShapeDtypeStruct((B * S, dim), out_dtype),       # q (scaled)
            jax.ShapeDtypeStruct((B * S, kv_size), out_dtype),   # k
            jax.ShapeDtypeStruct((B * S, kv_size), out_dtype),   # v
        ),
        grid_spec=pltpu.PrefetchScalarGridSpec(
            num_scalar_prefetch=0,
            grid=(B, n_head, ns),
            in_specs=[
                pl.BlockSpec((ts, D), q_map),          # q slice of qkv
                pl.BlockSpec((ts, D), k_map),          # k slice of qkv
                pl.BlockSpec((ts, D), v_map),          # v slice of qkv
                pl.BlockSpec((1, D), w_map),           # q_norm weight
                pl.BlockSpec((1, D), w_map),           # k_norm weight
                pl.BlockSpec((ts, D // 2), t_map),     # cos (half-width table)
                pl.BlockSpec((ts, D // 2), t_map),     # sin (half-width table)
            ],
            out_specs=(
                pl.BlockSpec((ts, D), o_map),
                pl.BlockSpec((ts, D), o_map),
                pl.BlockSpec((ts, D), o_map),
            ),
        ),
        compiler_params=pltpu.CompilerParams(
            dimension_semantics=("parallel", "parallel", "parallel")),
    )(qkv, qkv, qkv,
      q_norm_w.reshape(1, D).astype(jnp.float32),
      k_norm_w.reshape(1, D).astype(jnp.float32),
      cos.astype(jnp.float32), sin.astype(jnp.float32))


# ---------------------------------------------------------------------------
# Causal flash attention kernel (online softmax).
# Q/K are pre-normed/roped bf16 (scale folded into Q); causal mask generated
# in-kernel; fully-masked kv tiles skipped (compute + clamped DMAs).
# ---------------------------------------------------------------------------
def _flash_kernel(q_ref, k_ref, v_ref, o_ref, m_scr, l_scr, acc_scr):
    qi = pl.program_id(2)
    ki = pl.program_id(3)
    tq = q_ref.shape[0]
    tk = k_ref.shape[0]

    @pl.when(ki == 0)
    def _():
        m_scr[...] = jnp.full_like(m_scr, -jnp.inf)
        l_scr[...] = jnp.zeros_like(l_scr)
        acc_scr[...] = jnp.zeros_like(acc_scr)

    # Causal tile skip: only process kv tiles with at least one visible column.
    @pl.when(ki * tk <= qi * tq + (tq - 1))
    def _():
        q = q_ref[...]                       # (tq, D) bf16, pre-prepped, *scale
        k = k_ref[...]                       # (tk, D) bf16, pre-prepped
        s = lax.dot_general(q, k, dimension_numbers=(((1,), (1,)), ((), ())),
                            preferred_element_type=jnp.float32)      # (tq, tk)

        rows = qi * tq + lax.broadcasted_iota(jnp.int32, (tq, tk), 0)
        cols = ki * tk + lax.broadcasted_iota(jnp.int32, (tq, tk), 1)
        keep = cols <= rows                  # causal mask, generated in-kernel
        s = jnp.where(keep, s, -1e30)

        m_prev = m_scr[...]
        m_new = jnp.maximum(m_prev, jnp.max(s, axis=-1, keepdims=True))
        alpha = jnp.exp(m_prev - m_new)
        p = jnp.where(keep, jnp.exp(s - m_new), 0.0)   # explicit zero on masked
        l_scr[...] = alpha * l_scr[...] + jnp.sum(p, axis=-1, keepdims=True)
        acc_scr[...] = alpha * acc_scr[...] + jnp.dot(
            p.astype(jnp.bfloat16), v_ref[...],
            preferred_element_type=jnp.float32)
        m_scr[...] = m_new

    @pl.when(ki == pl.num_programs(3) - 1)
    def _():
        inv_l = pl.reciprocal(l_scr[...], approx=True)
        o_ref[...] = (acc_scr[...] * inv_l).astype(o_ref.dtype)


def flash_attention(q_prep, k_prep, v_prep, *, B, S, n_head, head_dim, out_dtype):
    D = head_dim
    tq = _pick_tile(S, (256, 128, 64, 32, 16, 8))
    tk = _pick_tile(S, (256, 128))
    nq, nk = S // tq, S // tk
    grid = (B, n_head, nq, nk)

    def q_map(b, h, qi, ki):
        return (b * nq + qi, h)

    def kv_map(b, h, qi, ki):
        # Clamp skipped (fully masked) kv tiles to the last visible block so
        # no new DMA is issued for them.
        last_visible = (qi * tq + tq - 1) // tk
        return (b * nk + jnp.minimum(ki, last_visible), h)

    return pl.pallas_call(
        _flash_kernel,
        out_shape=jax.ShapeDtypeStruct((B * S, n_head * D), out_dtype),
        grid_spec=pltpu.PrefetchScalarGridSpec(
            num_scalar_prefetch=0,
            grid=grid,
            in_specs=[
                pl.BlockSpec((tq, D), q_map),
                pl.BlockSpec((tk, D), kv_map),
                pl.BlockSpec((tk, D), kv_map),
            ],
            out_specs=pl.BlockSpec((tq, D), q_map),
            scratch_shapes=[
                pltpu.VMEM((tq, 1), jnp.float32),   # running max
                pltpu.VMEM((tq, 1), jnp.float32),   # running denom
                pltpu.VMEM((tq, D), jnp.float32),   # output accumulator
            ],
        ),
        compiler_params=pltpu.CompilerParams(
            dimension_semantics=("parallel", "parallel", "parallel", "arbitrary")),
    )(q_prep, k_prep, v_prep)


# ---------------------------------------------------------------------------
# Full Attention.forward (dense_type='l' / wqkv path, kv_cache=None prefill)
# ---------------------------------------------------------------------------
def attention_pallas(x, wqkv, wo, q_norm_w, k_norm_w, freqs_cis, *,
                     n_head, n_local_heads, head_dim, eps=1e-5, use_qk_norm=True):
    B, S, dim = x.shape
    assert dim == n_head * head_dim
    assert n_local_heads == n_head  # TODO(synk): GQA K/V head broadcast not implemented
    scale = 1.0 / math.sqrt(head_dim)

    # 1. QKV projection; wqkv stays in (out, in) layout (no runtime transpose).
    qkv = matmul_nt(x.reshape(B * S, dim), wqkv)          # (B*S, total_head_dim)

    # 2. Per-head RMSNorm + rotary + scale folding, once per token/head, bf16.
    cos = freqs_cis[..., 0]                               # (S, head_dim//2)
    sin = freqs_cis[..., 1]
    q_prep, k_prep, v_prep = qkv_prep(
        qkv, q_norm_w, k_norm_w, cos, sin, B=B, S=S, n_head=n_head,
        n_local_heads=n_local_heads, head_dim=head_dim, eps=eps,
        use_qk_norm=use_qk_norm, scale=scale)

    # 3. Causal flash attention; output written directly as (B*S, dim).
    y2d = flash_attention(q_prep, k_prep, v_prep, B=B, S=S, n_head=n_head,
                          head_dim=head_dim, out_dtype=x.dtype)

    # 4. Output projection.
    out = matmul_nt(y2d, wo)
    return out.reshape(B, S, dim)


# ---------------------------------------------------------------------------
# Pure-JAX reference (mirrors the PyTorch module exactly, incl. interleave)
# ---------------------------------------------------------------------------
def _rmsnorm_ref(x, w, eps):
    x32 = x.astype(jnp.float32)
    n = x32 * lax.rsqrt(jnp.mean(x32 * x32, axis=-1, keepdims=True) + eps)
    return n.astype(x.dtype) * w


def _rope_ref(x, freqs_cis):
    B, S, H, D = x.shape
    xf = x.astype(jnp.float32)
    xs = xf.reshape(B, S, H, 2, D // 2).transpose(0, 1, 2, 4, 3)   # (..., D//2, 2)
    fc = freqs_cis.reshape(1, S, 1, D // 2, 2).astype(jnp.float32)
    o0 = xs[..., 0] * fc[..., 0] - xs[..., 1] * fc[..., 1]
    o1 = xs[..., 1] * fc[..., 0] + xs[..., 0] * fc[..., 1]
    out = jnp.stack([o0, o1], axis=-1).reshape(B, S, H, D)
    return out.astype(x.dtype)


def attention_ref(x, wqkv, wo, qnw, knw, freqs_cis, mask, *,
                  n_head, n_local_heads, head_dim, eps, use_qk_norm):
    B, S, dim = x.shape
    kv_size = n_local_heads * head_dim
    scale = 1.0 / math.sqrt(head_dim)
    hi = lax.Precision.HIGHEST
    qkv = jnp.einsum('bsd,od->bso', x, wqkv, precision=hi)
    q = qkv[..., :dim].reshape(B, S, n_head, head_dim)
    k = qkv[..., dim:dim + kv_size].reshape(B, S, n_local_heads, head_dim)
    v = qkv[..., dim + kv_size:].reshape(B, S, n_local_heads, head_dim)
    if use_qk_norm:
        q = _rmsnorm_ref(q, qnw, eps)
        k = _rmsnorm_ref(k, knw, eps)
    q = _rope_ref(q, freqs_cis)
    k = _rope_ref(k, freqs_cis)
    q, k, v = (t.transpose(0, 2, 1, 3) for t in (q, k, v))
    logits = jnp.einsum('bhqd,bhkd->bhqk', q, k, precision=hi) * scale
    logits = logits.astype(jnp.float32)
    logits = jnp.where(mask[None, None], logits, jnp.finfo(jnp.float32).min)
    probs = jax.nn.softmax(logits, axis=-1)
    y = jnp.einsum('bhqk,bhkd->bhqd', probs, v, precision=hi)
    y = y.transpose(0, 2, 1, 3).reshape(B, S, dim)
    return jnp.einsum('bsd,od->bso', y, wo, precision=hi)


# ---------------------------------------------------------------------------
if __name__ == "__main__":
    B, S = 2, 16
    n_head = 2
    n_local_heads = 2
    head_dim = 128                       # lane-dense head dim
    dim = n_head * head_dim              # 256
    eps = 1e-5
    use_qk_norm = True
    total_head_dim = (n_head + 2 * n_local_heads) * head_dim   # 768

    key = jax.random.PRNGKey(0)
    kx, kq, ko, kw1, kw2 = jax.random.split(key, 5)
    x = jax.random.normal(kx, (B, S, dim), dtype=jnp.float32)
    wqkv = jax.random.normal(kq, (total_head_dim, dim), dtype=jnp.float32) / math.sqrt(dim)
    wo = jax.random.normal(ko, (dim, dim), dtype=jnp.float32) / math.sqrt(dim)
    q_norm_w = 1.0 + 0.02 * jax.random.normal(kw1, (head_dim,), dtype=jnp.float32)
    k_norm_w = 1.0 + 0.02 * jax.random.normal(kw2, (head_dim,), dtype=jnp.float32)

    # Rotary table: freqs_cis[s, i] = (cos, sin) of s * theta_i.
    half = head_dim // 2
    pos = jnp.arange(S, dtype=jnp.float32)
    inv_freq = 1.0 / (10000.0 ** (jnp.arange(half, dtype=jnp.float32) / half))
    angles = pos[:, None] * inv_freq[None, :]                   # (S, half)
    freqs_cis = jnp.stack([jnp.cos(angles), jnp.sin(angles)], axis=-1)  # (S, half, 2)

    mask = jnp.tril(jnp.ones((S, S), dtype=bool))               # causal (for reference)

    out = attention_pallas(x, wqkv, wo, q_norm_w, k_norm_w, freqs_cis,
                           n_head=n_head, n_local_heads=n_local_heads,
                           head_dim=head_dim, eps=eps, use_qk_norm=use_qk_norm)
    out = jax.block_until_ready(out)

    ref = attention_ref(x, wqkv, wo, q_norm_w, k_norm_w, freqs_cis, mask,
                        n_head=n_head, n_local_heads=n_local_heads,
                        head_dim=head_dim, eps=eps, use_qk_norm=use_qk_norm)

    assert out.shape == (B, S, dim)
    # Tolerance reflects bf16 MXU operands in the attention kernel (per perf
    # guidance) compared against a float32 HIGHEST-precision reference.
    max_err = float(jnp.max(jnp.abs(out - ref)))
    assert jnp.allclose(out, ref, atol=5e-2, rtol=5e-2), f"mismatch, max|err|={max_err}"

    print("KERNEL_OK")
</pallas_src>

<mosaic_0001>
module attributes {stable_mosaic.version = 11 : i64} {
  func.func @_matmul_nt_kernel(%arg0: i32, %arg1: i32, %arg2: i32, %arg3: memref<32x256xf32, #tpu.memory_space<vmem>>, %arg4: memref<256x256xf32, #tpu.memory_space<vmem>>, %arg5: memref<32x256xf32, #tpu.memory_space<vmem>>, %arg6: memref<32x256xf32, #tpu.memory_space<vmem>>) attributes {dimension_semantics = [#tpu.dimension_semantics<parallel>, #tpu.dimension_semantics<parallel>, #tpu.dimension_semantics<arbitrary>], iteration_bounds = array<i64: 1, 3, 1>, scalar_prefetch = 0 : i64, scratch_operands = 1 : i64, tpu.core_type = #tpu.core_type<tc>, window_params = [{transform_indices = @transform_0, window_bounds = array<i64: 32, 256>}, {transform_indices = @transform_1, window_bounds = array<i64: 256, 256>}, {transform_indices = @transform_2, window_bounds = array<i64: 32, 256>}]} {
    %c0_i32 = arith.constant 0 : i32
    %0 = arith.cmpi eq, %arg2, %c0_i32 : i32
    %1 = arith.extui %0 : i1 to i32
    %c0_i32_0 = arith.constant 0 : i32
    %2 = arith.cmpi ne, %1, %c0_i32_0 : i32
    scf.if %2 {
      %cst_10 = arith.constant 0.000000e+00 : f32
      %12 = vector.broadcast %cst_10 : f32 to vector<32x256xf32>
      %c0_11 = arith.constant 0 : index
      %c0_12 = arith.constant 0 : index
      %13 = vector.load %arg6[%c0_11, %c0_12] : memref<32x256xf32, #tpu.memory_space<vmem>>, vector<32x256xf32>
      tpu.vector_store %arg6[%c0_11, %c0_12], %12 {strides = array<i32>} : memref<32x256xf32, #tpu.memory_space<vmem>>, vector<32x256xf32>,
    } else {
    }
    %c0 = arith.constant 0 : index
    %c0_1 = arith.constant 0 : index
    %3 = vector.load %arg6[%c0, %c0_1] : memref<32x256xf32, #tpu.memory_space<vmem>>, vector<32x256xf32>
    %c0_2 = arith.constant 0 : index
    %c0_3 = arith.constant 0 : index
    %4 = vector.load %arg3[%c0_2, %c0_3] : memref<32x256xf32, #tpu.memory_space<vmem>>, vector<32x256xf32>
    %c0_4 = arith.constant 0 : index
    %c0_5 = arith.constant 0 : index
    %5 = vector.load %arg4[%c0_4, %c0_5] : memref<256x256xf32, #tpu.memory_space<vmem>>, vector<256x256xf32>
    %cst = arith.constant dense<0.000000e+00> : vector<32x256xf32>
    %6 = tpu.matmul %4, %5, %cst {dimension_numbers = #tpu.dot_dimension_numbers<[1], [1], [0], [0], [0, 0, 1, 0], [], []>} : vector<32x256xf32>, vector<256x256xf32>, vector<32x256xf32> -> vector<32x256xf32>
    %7 = arith.addf %3, %6 : vector<32x256xf32>
    %c0_6 = arith.constant 0 : index
    %c0_7 = arith.constant 0 : index
    %8 = vector.load %arg6[%c0_6, %c0_7] : memref<32x256xf32, #tpu.memory_space<vmem>>, vector<32x256xf32>
    tpu.vector_store %arg6[%c0_6, %c0_7], %7 {strides = array<i32>} : memref<32x256xf32, #tpu.memory_space<vmem>>, vector<32x256xf32>,
    %c0_i32_8 = arith.constant 0 : i32
    %9 = arith.cmpi eq, %arg2, %c0_i32_8 : i32
    %10 = arith.extui %9 : i1 to i32
    %c0_i32_9 = arith.constant 0 : i32
    %11 = arith.cmpi ne, %10, %c0_i32_9 : i32
    scf.if %11 {
      %c0_10 = arith.constant 0 : index
      %c0_11 = arith.constant 0 : index
      %12 = vector.load %arg6[%c0_10, %c0_11] : memref<32x256xf32, #tpu.memory_space<vmem>>, vector<32x256xf32>
      %c0_12 = arith.constant 0 : index
      %c0_13 = arith.constant 0 : index
      %13 = vector.load %arg5[%c0_12, %c0_13] : memref<32x256xf32, #tpu.memory_space<vmem>>, vector<32x256xf32>
      tpu.vector_store %arg5[%c0_12, %c0_13], %12 {strides = array<i32>} : memref<32x256xf32, #tpu.memory_space<vmem>>, vector<32x256xf32>,
    } else {
    }
    return
  }
  func.func @transform_0(%arg0: i32, %arg1: i32, %arg2: i32) -> (i32, i32) {
    %c0_i32 = arith.constant 0 : i32
    return %arg0, %arg2 : i32, i32
  }
  func.func @transform_1(%arg0: i32, %arg1: i32, %arg2: i32) -> (i32, i32) {
    %c0_i32 = arith.constant 0 : i32
    return %arg1, %arg2 : i32, i32
  }
  func.func @transform_2(%arg0: i32, %arg1: i32, %arg2: i32) -> (i32, i32) {
    %c0_i32 = arith.constant 0 : i32
    return %arg0, %arg1 : i32, i32
  }
}

</mosaic_0001>

<llo_original>
// kernel: tpu_custom_call.1
$region0: #{tpu_custom_call.1}
  #allocation0 [shape = 'u32[]', space=smem, size = 0x4, offset = 0x4, fixed_abs, tag = 'smem constant byte address 0x4 - core index']
  #allocation1 [shape = 'u32[72,128]{1,0:T(1,128)}', space=vmem, size = 0x9000, scoped, tag = 'internal scratch']
  #allocation2 [shape = 'f32[32,256]{1,0:T(8,128)}', space=vmem, size = 0x8000, scoped, tag = 'scratch operand']
  %s0 = inlined_call_operand.hbm [shape: f32[32,256], index: 0, kind: input, shape index: {}]
  %s1 = inlined_call_operand.hbm [shape: f32[768,256], index: 1, kind: input, shape index: {}]
  %s2 = inlined_call_operand.hbm [shape: f32[32,768], index: 2, kind: output, shape index: {}]
  %s3 = sld [smem:[#allocation0]]
  $region57: #{tpu_custom_call.1} parent=0
    _
  %s5 = ssub.s32 1, %s3
  %s6 = scalar_select 0, %s5, %s3
  $region1: #{tpu_custom_call.1} parent=0
    #allocation3 [shape = 'u8[32768]{0}', space=vmem, size = 0x8000, scoped, tag = 'input window, operand 0, single buffered']
    #allocation4 [shape = 's32[2]{0}', space=sflag, size = 0x8, scoped, tag = 'scoped memory for tpu_custom_call.1']
    #allocation5 [shape = 's32[2]{0}', space=sflag, size = 0x8, scoped, tag = 'scoped memory for tpu_custom_call.1']
    #allocation6 [shape = 'u8[524288]{0}', space=vmem, size = 0x80000, scoped, tag = 'input window, operand 1']
    #allocation7 [shape = 's32[2]{0}', space=sflag, size = 0x8, scoped, tag = 'scoped memory for tpu_custom_call.1']
    #allocation8 [shape = 'u8[65536]{0}', space=vmem, size = 0x10000, scoped, tag = 'output window, operand 0']
    %7 = vsyncpa [#allocation4], 0
    %8 = vsyncpa [#allocation7], 0
    %s9 = scalar_lea.sflag [#allocation7], 1
    %10 = vsyncpa %s9, 0
    %11 = vsyncpa [#allocation5], 0
    %s12 = scalar_lea.sflag [#allocation5], 1
    %13 = vsyncpa %s12, 0
    loop: start=0, step=1, limit=5
    $region2: #{tpu_custom_call.1} parent=1 // loop_pre_header
      _
    $region3: #{tpu_custom_call.1} parent=1 // loop_header
      %s15 = sphi 0, %s19
      %p16 = scmp.ge.s32.totalorder %s15, 5
      %s22 = sphi 0, %s41
      %s23 = sphi 0, %s37
      %s24 = sphi 0, %s33
      %s25 = sphi 0, %s22
      %s26 = sphi 0, %s23
      %s27 = sphi 0, %s24
      %s28 = sphi 0, %s25
      %s29 = sphi 0, %s26
      %s30 = sphi 0, %s27
      %s46 = sphi 0, %s48
      %s49 = sphi 0, %s46
      %s50 = sphi 0, %s49
      %s66 = sphi 0, %s50
      %s74 = sphi 0, %s76
      %s77 = sphi 0, %s74
      %s78 = sphi 0, %s77
      %s94 = sphi 0, %s78
      %s102 = sphi 0, %s104
      %s105 = sphi 0, %s102
      %s106 = sphi 0, %s105
      %s122 = sphi 0, %s106
    $region4: #{tpu_custom_call.1} parent=1 // loop_header_branch
      %18 = sbr.rel (%p16) target = $region8
    $region5: #{tpu_custom_call.1} parent=1 // loop_body
      %s20 = ssub.s32 %s15, 1
      %s21 = ssub.s32 %s15, 2
      %s31 = sadd.s32 1, %s24
      %p32 = scmp.ge.s32.totalorder %s31, 1
      %s33 = scalar_select %p32, 0, %s31
      %s34 = sadd.s32 1, %s23
      %s35 = scalar_select %p32, %s34, %s23
      %p36 = scmp.ge.s32.totalorder %s35, 3
      %s37 = scalar_select %p36, 0, %s35
      %s38 = sadd.s32 1, %s22
      %s39 = scalar_select %p36, %s38, %s22
      %p40 = scmp.ge.s32.totalorder %s39, 1
      %s41 = scalar_select %p40, 0, %s39
      %s42 = ssub.s32 %s22, %s41
      %s43 = ssub.s32 %s24, %s33
      %s44 = sor.u32 %s42, %s43
      %p45 = scmp.eq.s32.totalorder %s44, 0
      %s47 = sadd.s32 %s46, 1
      %s48 = scalar_select %p45, %s46, %s47
      %p51 = pneg %p45
      %p52 = scmp.eq.s32.totalorder %s15, 2
      %p53 = por %p51, %p52
      %p54 = scmp.ne.s32.totalorder %s46, %s49
      %p55 = scmp.eq.s32.totalorder %s15, 0
      %p56 = por %p54, %p55
      %p57 = scmp.ne.s32.totalorder %s46, %s49
      %p58 = scmp.eq.s32.totalorder %s20, 2
      %p59 = por %p57, %p58
      %p60 = scmp.ne.s32.totalorder %s49, %s50
      %p61 = scmp.eq.s32.totalorder %s20, 0
      %p62 = por %p60, %p61
      %p63 = scmp.ne.s32.totalorder %s49, %s50
      %p64 = scmp.eq.s32.totalorder %s21, 2
      %p65 = por %p63, %p64
      %p67 = scmp.ne.s32.totalorder %s50, %s66
      %p68 = scmp.eq.s32.totalorder %s21, 0
      %p69 = por %p67, %p68
      %s70 = ssub.s32 %s23, %s37
      %s71 = ssub.s32 %s24, %s33
      %s72 = sor.u32 %s70, %s71
      %p73 = scmp.eq.s32.totalorder %s72, 0
      %s75 = sadd.s32 %s74, 1
      %s76 = scalar_select %p73, %s74, %s75
      %p79 = pneg %p73
      %p80 = scmp.eq.s32.totalorder %s15, 2
      %p81 = por %p79, %p80
      %p82 = scmp.ne.s32.totalorder %s74, %s77
      %p83 = scmp.eq.s32.totalorder %s15, 0
      %p84 = por %p82, %p83
      %p85 = scmp.ne.s32.totalorder %s74, %s77
      %p86 = scmp.eq.s32.totalorder %s20, 2
      %p87 = por %p85, %p86
      %p88 = scmp.ne.s32.totalorder %s77, %s78
      %p89 = scmp.eq.s32.totalorder %s20, 0
      %p90 = por %p88, %p89
      %p91 = scmp.ne.s32.totalorder %s77, %s78
      %p92 = scmp.eq.s32.totalorder %s21, 2
      %p93 = por %p91, %p92
      %p95 = scmp.ne.s32.totalorder %s78, %s94
      %p96 = scmp.eq.s32.totalorder %s21, 0
      %p97 = por %p95, %p96
      %s98 = ssub.s32 %s22, %s41
      %s99 = ssub.s32 %s23, %s37
      %s100 = sor.u32 %s98, %s99
      %p101 = scmp.eq.s32.totalorder %s100, 0
      %s103 = sadd.s32 %s102, 1
      %s104 = scalar_select %p101, %s102, %s103
      %p107 = pneg %p101
      %p108 = scmp.eq.s32.totalorder %s15, 2
      %p109 = por %p107, %p108
      %p110 = scmp.ne.s32.totalorder %s102, %s105
      %p111 = scmp.eq.s32.totalorder %s15, 0
      %p112 = por %p110, %p111
      %p113 = scmp.ne.s32.totalorder %s102, %s105
      %p114 = scmp.eq.s32.totalorder %s20, 2
      %p115 = por %p113, %p114
      %p116 = scmp.ne.s32.totalorder %s105, %s106
      %p117 = scmp.eq.s32.totalorder %s20, 0
      %p118 = por %p116, %p117
      %p119 = scmp.ne.s32.totalorder %s105, %s106
      %p120 = scmp.eq.s32.totalorder %s21, 2
      %p121 = por %p119, %p120
      %p123 = scmp.ne.s32.totalorder %s106, %s122
      %p124 = scmp.eq.s32.totalorder %s21, 0
      %p125 = por %p123, %p124
      %p126 = scmp.le.s32.totalorder 1, %s15
      %p127 = scmp.lt.s32.totalorder %s15, 4
      %p128 = pnand %p126, %p127
      %p129 = pneg %p128
      // Predicated region
      $region9: #{tpu_custom_call.1} parent=5 // pred_check
        _
      $region10: #{tpu_custom_call.1} parent=5 // pred_check_branch
        %131 = sbr.rel (%p128) target = $region12
      $region11: #{tpu_custom_call.1} parent=5 // pred_region
        %s132 = ssub.s32 %s15, 1
        // Predicated region
        $region13: #{tpu_custom_call.1} parent=11 // pred_check
          %p133 = pneg %p62
        $region14: #{tpu_custom_call.1} parent=11 // pred_check_branch
          %135 = sbr.rel (%p133) target = $region16
        $region15: #{tpu_custom_call.1} parent=11 // pred_region
          %s136 = smul.u32 4, %s25
          %s137 = smul.u32 2, %s27
          %139 = vsyncadd [#allocation4], 0
          %s140 = smul.addr %s136, 2
          %s141 = sadd.s32 %s137, %s140
          %s142 = smul.addr %s141, 8
          %s143 = scalar_lea.hbm %s0, %s142
          %s144 = sshll.u32 %s143, 4
          %s145 = int_to_ptr.hbm [resolvable:$true] %s144
          %s146 = sshll.u32 [#allocation3], 4
          %s147 = int_to_ptr.vmem [resolvable:$true] %s146
          %152 = dma.hbm_to_vmem [thread:$0]  %s145, 1024, %s147, [#allocation4], 256, 256, 16
        $region16: #{tpu_custom_call.1} parent=11 // pred_fallthru
          _
      $region12: #{tpu_custom_call.1} parent=5 // pred_fallthru
        _
      %p153 = scmp.lt.s32.totalorder %s15, 3
      // Predicated region
      $region17: #{tpu_custom_call.1} parent=5 // pred_check
        %p154 = pneg %p153
      $region18: #{tpu_custom_call.1} parent=5 // pred_check_branch
        %156 = sbr.rel (%p154) target = $region20
      $region19: #{tpu_custom_call.1} parent=5 // pred_region
        // Predicated region
        $region21: #{tpu_custom_call.1} parent=19 // pred_check
          %p157 = pneg %p84
        $region22: #{tpu_custom_call.1} parent=19 // pred_check_branch
          %159 = sbr.rel (%p157) target = $region24
        $region23: #{tpu_custom_call.1} parent=19 // pred_region
          %s160 = sand.u32 %s74, 1
          %s161 = scalar_lea.sflag [#allocation7], %s160
          %s162 = sand.u32 %s74, 1
          %s163 = smul.addr %s162, 512
          %s164 = scalar_lea.vmem [#allocation6], %s163
          %s165 = smul.u32 32, %s23
          %s166 = smul.u32 2, %s24
          %168 = vsyncadd %s161, 0
          %s169 = smul.addr %s165, 2
          %s170 = sadd.s32 %s166, %s169
          %s171 = smul.addr %s170, 8
          %s172 = scalar_lea.hbm %s1, %s171
          %s173 = sshll.u32 %s172, 4
          %s174 = int_to_ptr.hbm [resolvable:$true] %s173
          %s175 = sshll.u32 %s164, 4
          %s176 = int_to_ptr.vmem [resolvable:$true] %s175
          %181 = dma.hbm_to_vmem [thread:$0]  %s174, 8192, %s176, %s161, 256, 256, 16
        $region24: #{tpu_custom_call.1} parent=19 // pred_fallthru
          _
      $region20: #{tpu_custom_call.1} parent=5 // pred_fallthru
        _
      %p182 = scmp.le.s32.totalorder 1, %s15
      %p183 = scmp.lt.s32.totalorder %s15, 4
      %p184 = pnand %p182, %p183
      %p185 = pneg %p184
      // Predicated region
      $region25: #{tpu_custom_call.1} parent=5 // pred_check
        _
      $region26: #{tpu_custom_call.1} parent=5 // pred_check_branch
        %187 = sbr.rel (%p184) target = $region28
      $region27: #{tpu_custom_call.1} parent=5 // pred_region
        %s188 = ssub.s32 %s15, 1
        // Predicated region
        $region29: #{tpu_custom_call.1} parent=27 // pred_check
          %p189 = pneg %p62
        $region30: #{tpu_custom_call.1} parent=27 // pred_check_branch
          %191 = sbr.rel (%p189) target = $region32
        $region31: #{tpu_custom_call.1} parent=27 // pred_region
          %193 = dma.done [#allocation4], 1024
        $region32: #{tpu_custom_call.1} parent=27 // pred_fallthru
          _
        %s194 = sand.u32 %s77, 1
        %s195 = scalar_lea.sflag [#allocation7], %s194
        %s196 = sand.u32 %s77, 1
        %s197 = smul.addr %s196, 512
        %s198 = scalar_lea.vmem [#allocation6], %s197
        // Predicated region
        $region33: #{tpu_custom_call.1} parent=27 // pred_check
          %p199 = pneg %p90
        $region34: #{tpu_custom_call.1} parent=27 // pred_check_branch
          %201 = sbr.rel (%p199) target = $region36
        $region35: #{tpu_custom_call.1} parent=27 // pred_region
          %203 = dma.done %s195, 8192
        $region36: #{tpu_custom_call.1} parent=27 // pred_fallthru
          _
        %p204 = pneg %p62
        %p205 = pneg %p59
        %s206 = sand.u32 %s77, 1
        %s207 = scalar_lea.sflag [#allocation7], %s206
        %s208 = sand.u32 %s77, 1
        %s209 = smul.addr %s208, 512
        %s210 = scalar_lea.vmem [#allocation6], %s209
        %p211 = pneg %p90
        %p212 = pneg %p87
        %p213 = pneg %p118
        %p214 = pneg %p115
        %s215 = sand.u32 %s105, 1
        %s216 = scalar_lea.sflag [#allocation5], %s215
        %s217 = sand.u32 %s105, 1
        %s218 = smul.addr %s217, 64
        %s219 = scalar_lea.vmem [#allocation8], %s218
        %s220 = smul.u32 4, %s25
        %s221 = smul.u32 2, %s27
        %s222 = smul.u32 32, %s26
        %s223 = smul.u32 2, %s27
        %s224 = smul.u32 4, %s25
        %s225 = smul.u32 2, %s26
        %p226 = scmp.eq.s32.totalorder %s27, 0
        // Predicated region
        $region37: #{tpu_custom_call.1} parent=27 // pred_check
          %p227 = pneg %p226
        $region38: #{tpu_custom_call.1} parent=27 // pred_check_branch
          %229 = sbr.rel (%p227) target = $region40
        $region39: #{tpu_custom_call.1} parent=27 // pred_region
          %230 = vst [vmem:[#allocation2] sm:$0xff] 0.0
          %231 = vst [vmem:[#allocation2 + $0x8] sm:$0xff] 0.0
          %232 = vst [vmem:[#allocation2 + $0x10] sm:$0xff] 0.0
          %233 = vst [vmem:[#allocation2 + $0x18] sm:$0xff] 0.0
          %234 = vst [vmem:[#allocation2 + $0x20] sm:$0xff] 0.0
          %235 = vst [vmem:[#allocation2 + $0x28] sm:$0xff] 0.0
          %236 = vst [vmem:[#allocation2 + $0x30] sm:$0xff] 0.0
          %237 = vst [vmem:[#allocation2 + $0x38] sm:$0xff] 0.0
        $region40: #{tpu_custom_call.1} parent=27 // pred_fallthru
          _
        %v238 = vld [vmem:[#allocation2] sm:$0xff]
        %v239 = vld [vmem:[#allocation2 + $0x8] sm:$0xff]
        %v240 = vld [vmem:[#allocation2 + $0x10] sm:$0xff]
        %v241 = vld [vmem:[#allocation2 + $0x18] sm:$0xff]
        %v242 = vld [vmem:[#allocation2 + $0x20] sm:$0xff]
        %v243 = vld [vmem:[#allocation2 + $0x28] sm:$0xff]
        %v244 = vld [vmem:[#allocation2 + $0x30] sm:$0xff]
        %v245 = vld [vmem:[#allocation2 + $0x38] sm:$0xff]
        %v246 = vld [vmem:[#allocation3] sm:$0xff]
        %v247 = vld [vmem:[#allocation3 + $0x8] sm:$0xff]
        %v248 = vld [vmem:[#allocation3 + $0x10] sm:$0xff]
        %v249 = vld [vmem:[#allocation3 + $0x18] sm:$0xff]
        %v250 = vld [vmem:[#allocation3 + $0x20] sm:$0xff]
        %v251 = vld [vmem:[#allocation3 + $0x28] sm:$0xff]
        %v252 = vld [vmem:[#allocation3 + $0x30] sm:$0xff]
        %v253 = vld [vmem:[#allocation3 + $0x38] sm:$0xff]
        %v254 = vld [vmem:[%s198] sm:$0xff]
        %v255 = vld [vmem:[%s198 + $0x8] sm:$0xff]
        %v256 = vld [vmem:[%s198 + $0x10] sm:$0xff]
        %v257 = vld [vmem:[%s198 + $0x18] sm:$0xff]
        %v258 = vld [vmem:[%s198 + $0x20] sm:$0xff]
        %v259 = vld [vmem:[%s198 + $0x28] sm:$0xff]
        %v260 = vld [vmem:[%s198 + $0x30] sm:$0xff]
        %v261 = vld [vmem:[%s198 + $0x38] sm:$0xff]
        %v262 = vld [vmem:[%s198 + $0x40] sm:$0xff]
        %v263 = vld [vmem:[%s198 + $0x48] sm:$0xff]
        %v264 = vld [vmem:[%s198 + $0x50] sm:$0xff]
        %v265 = vld [vmem:[%s198 + $0x58] sm:$0xff]
        %v266 = vld [vmem:[%s198 + $0x60] sm:$0xff]
        %v267 = vld [vmem:[%s198 + $0x68] sm:$0xff]
        %v268 = vld [vmem:[%s198 + $0x70] sm:$0xff]
        %v269 = vld [vmem:[%s198 + $0x78] sm:$0xff]
        %v270 = vld [vmem:[%s198 + $0x80] sm:$0xff]
        %v271 = vld [vmem:[%s198 + $0x88] sm:$0xff]
        %v272 = vld [vmem:[%s198 + $0x90] sm:$0xff]
        %v273 = vld [vmem:[%s198 + $0x98] sm:$0xff]
        %v274 = vld [vmem:[%s198 + $0xa0] sm:$0xff]
        %v275 = vld [vmem:[%s198 + $0xa8] sm:$0xff]
        %v276 = vld [vmem:[%s198 + $0xb0] sm:$0xff]
        %v277 = vld [vmem:[%s198 + $0xb8] sm:$0xff]
        %v278 = vld [vmem:[%s198 + $0xc0] sm:$0xff]
        %v279 = vld [vmem:[%s198 + $0xc8] sm:$0xff]
        %v280 = vld [vmem:[%s198 + $0xd0] sm:$0xff]
        %v281 = vld [vmem:[%s198 + $0xd8] sm:$0xff]
        %v282 = vld [vmem:[%s198 + $0xe0] sm:$0xff]
        %v283 = vld [vmem:[%s198 + $0xe8] sm:$0xff]
        %v284 = vld [vmem:[%s198 + $0xf0] sm:$0xff]
        %v285 = vld [vmem:[%s198 + $0xf8] sm:$0xff]
        %v286 = vld [vmem:[%s198 + $0x100] sm:$0xff]
        %v287 = vld [vmem:[%s198 + $0x108] sm:$0xff]
        %v288 = vld [vmem:[%s198 + $0x110] sm:$0xff]
        %v289 = vld [vmem:[%s198 + $0x118] sm:$0xff]
        %v290 = vld [vmem:[%s198 + $0x120] sm:$0xff]
        %v291 = vld [vmem:[%s198 + $0x128] sm:$0xff]
        %v292 = vld [vmem:[%s198 + $0x130] sm:$0xff]
        %v293 = vld [vmem:[%s198 + $0x138] sm:$0xff]
        %v294 = vld [vmem:[%s198 + $0x140] sm:$0xff]
        %v295 = vld [vmem:[%s198 + $0x148] sm:$0xff]
        %v296 = vld [vmem:[%s198 + $0x150] sm:$0xff]
        %v297 = vld [vmem:[%s198 + $0x158] sm:$0xff]
        %v298 = vld [vmem:[%s198 + $0x160] sm:$0xff]
        %v299 = vld [vmem:[%s198 + $0x168] sm:$0xff]
        %v300 = vld [vmem:[%s198 + $0x170] sm:$0xff]
        %v301 = vld [vmem:[%s198 + $0x178] sm:$0xff]
        %v302 = vld [vmem:[%s198 + $0x180] sm:$0xff]
        %v303 = vld [vmem:[%s198 + $0x188] sm:$0xff]
        %v304 = vld [vmem:[%s198 + $0x190] sm:$0xff]
        %v305 = vld [vmem:[%s198 + $0x198] sm:$0xff]
        %v306 = vld [vmem:[%s198 + $0x1a0] sm:$0xff]
        %v307 = vld [vmem:[%s198 + $0x1a8] sm:$0xff]
        %v308 = vld [vmem:[%s198 + $0x1b0] sm:$0xff]
        %v309 = vld [vmem:[%s198 + $0x1b8] sm:$0xff]
        %v310 = vld [vmem:[%s198 + $0x1c0] sm:$0xff]
        %v311 = vld [vmem:[%s198 + $0x1c8] sm:$0xff]
        %v312 = vld [vmem:[%s198 + $0x1d0] sm:$0xff]
        %v313 = vld [vmem:[%s198 + $0x1d8] sm:$0xff]
        %v314 = vld [vmem:[%s198 + $0x1e0] sm:$0xff]
        %v315 = vld [vmem:[%s198 + $0x1e8] sm:$0xff]
        %v316 = vld [vmem:[%s198 + $0x1f0] sm:$0xff]
        %v317 = vld [vmem:[%s198 + $0x1f8] sm:$0xff]
        %318 = vmatpush.xpose.msra.mxu0 %v284
        %319 = vmatpush.xpose.msra.mxu0 %v282
        %320 = vmatpush.xpose.msra.mxu0 %v280
        %321 = vmatpush.xpose.msra.mxu0 %v278
        %322 = vmatpush.xpose.msra.mxu0 %v276
        %323 = vmatpush.xpose.msra.mxu0 %v274
        %324 = vmatpush.xpose.msra.mxu0 %v272
        %325 = vmatpush.xpose.msra.mxu0 %v270
        %326 = vmatpush.xpose.msra.mxu0 %v268
        %327 = vmatpush.xpose.msra.mxu0 %v266
        %328 = vmatpush.xpose.msra.mxu0 %v264
        %329 = vmatpush.xpose.msra.mxu0 %v262
        %330 = vmatpush.xpose.msra.mxu0 %v260
        %331 = vmatpush.xpose.msra.mxu0 %v258
        %332 = vmatpush.xpose.msra.mxu0 %v256
        %333 = vmatpush.xpose.msra.mxu0 %v254
        %334 = vmatmul.f32.gmra.mxu0 %v246
        %v335 = vpop.f32.mrf.mxu0
        %v336 = vadd.f32 0.0, %v335
        %337 = vmatmul.f32.gmra.mxu0 %v248
        %v338 = vpop.f32.mrf.mxu0
        %v339 = vadd.f32 0.0, %v338
        %340 = vmatmul.f32.gmra.mxu0 %v250
        %v341 = vpop.f32.mrf.mxu0
        %v342 = vadd.f32 0.0, %v341
        %343 = vmatmul.f32.gmra.mxu0 %v252
        %v344 = vpop.f32.mrf.mxu0
        %v345 = vadd.f32 0.0, %v344
        %346 = vdwg.mxu0
        %347 = vmatpush.xpose.msra.mxu0 %v285
        %348 = vmatpush.xpose.msra.mxu0 %v283
        %349 = vmatpush.xpose.msra.mxu0 %v281
        %350 = vmatpush.xpose.msra.mxu0 %v279
        %351 = vmatpush.xpose.msra.mxu0 %v277
        %352 = vmatpush.xpose.msra.mxu0 %v275
        %353 = vmatpush.xpose.msra.mxu0 %v273
        %354 = vmatpush.xpose.msra.mxu0 %v271
        %355 = vmatpush.xpose.msra.mxu0 %v269
        %356 = vmatpush.xpose.msra.mxu0 %v267
        %357 = vmatpush.xpose.msra.mxu0 %v265
        %358 = vmatpush.xpose.msra.mxu0 %v263
        %359 = vmatpush.xpose.msra.mxu0 %v261
        %360 = vmatpush.xpose.msra.mxu0 %v259
        %361 = vmatpush.xpose.msra.mxu0 %v257
        %362 = vmatpush.xpose.msra.mxu0 %v255
        %363 = vmatmul.f32.gmra.mxu0 %v247
        %v364 = vpop.f32.mrf.mxu0
        %v365 = vadd.f32 %v336, %v364
        %366 = vmatmul.f32.gmra.mxu0 %v249
        %v367 = vpop.f32.mrf.mxu0
        %v368 = vadd.f32 %v339, %v367
        %369 = vmatmul.f32.gmra.mxu0 %v251
        %v370 = vpop.f32.mrf.mxu0
        %v371 = vadd.f32 %v342, %v370
        %372 = vmatmul.f32.gmra.mxu0 %v253
        %v373 = vpop.f32.mrf.mxu0
        %v374 = vadd.f32 %v345, %v373
        %375 = vdwg.mxu0
        %376 = vmatpush.xpose.msra.mxu0 %v316
        %377 = vmatpush.xpose.msra.mxu0 %v314
        %378 = vmatpush.xpose.msra.mxu0 %v312
        %379 = vmatpush.xpose.msra.mxu0 %v310
        %380 = vmatpush.xpose.msra.mxu0 %v308
        %381 = vmatpush.xpose.msra.mxu0 %v306
        %382 = vmatpush.xpose.msra.mxu0 %v304
        %383 = vmatpush.xpose.msra.mxu0 %v302
        %384 = vmatpush.xpose.msra.mxu0 %v300
        %385 = vmatpush.xpose.msra.mxu0 %v298
        %386 = vmatpush.xpose.msra.mxu0 %v296
        %387 = vmatpush.xpose.msra.mxu0 %v294
        %388 = vmatpush.xpose.msra.mxu0 %v292
        %389 = vmatpush.xpose.msra.mxu0 %v290
        %390 = vmatpush.xpose.msra.mxu0 %v288
        %391 = vmatpush.xpose.msra.mxu0 %v286
        %392 = vmatmul.f32.gmra.mxu0 %v246
        %v393 = vpop.f32.mrf.mxu0
        %v394 = vadd.f32 0.0, %v393
        %395 = vmatmul.f32.gmra.mxu0 %v248
        %v396 = vpop.f32.mrf.mxu0
        %v397 = vadd.f32 0.0, %v396
        %398 = vmatmul.f32.gmra.mxu0 %v250
        %v399 = vpop.f32.mrf.mxu0
        %v400 = vadd.f32 0.0, %v399
        %401 = vmatmul.f32.gmra.mxu0 %v252
        %v402 = vpop.f32.mrf.mxu0
        %v403 = vadd.f32 0.0, %v402
        %404 = vdwg.mxu0
        %405 = vmatpush.xpose.msra.mxu0 %v317
        %406 = vmatpush.xpose.msra.mxu0 %v315
        %407 = vmatpush.xpose.msra.mxu0 %v313
        %408 = vmatpush.xpose.msra.mxu0 %v311
        %409 = vmatpush.xpose.msra.mxu0 %v309
        %410 = vmatpush.xpose.msra.mxu0 %v307
        %411 = vmatpush.xpose.msra.mxu0 %v305
        %412 = vmatpush.xpose.msra.mxu0 %v303
        %413 = vmatpush.xpose.msra.mxu0 %v301
        %414 = vmatpush.xpose.msra.mxu0 %v299
        %415 = vmatpush.xpose.msra.mxu0 %v297
        %416 = vmatpush.xpose.msra.mxu0 %v295
        %417 = vmatpush.xpose.msra.mxu0 %v293
        %418 = vmatpush.xpose.msra.mxu0 %v291
        %419 = vmatpush.xpose.msra.mxu0 %v289
        %420 = vmatpush.xpose.msra.mxu0 %v287
        %421 = vmatmul.f32.gmra.mxu0 %v247
        %v422 = vpop.f32.mrf.mxu0
        %v423 = vadd.f32 %v394, %v422
        %424 = vmatmul.f32.gmra.mxu0 %v249
        %v425 = vpop.f32.mrf.mxu0
        %v426 = vadd.f32 %v397, %v425
        %427 = vmatmul.f32.gmra.mxu0 %v251
        %v428 = vpop.f32.mrf.mxu0
        %v429 = vadd.f32 %v400, %v428
        %430 = vmatmul.f32.gmra.mxu0 %v253
        %v431 = vpop.f32.mrf.mxu0
        %v432 = vadd.f32 %v403, %v431
        %433 = vdwg.mxu0
        %v434 = vadd.f32 %v238, %v365
        %v435 = vadd.f32 %v239, %v423
        %v436 = vadd.f32 %v240, %v368
        %v437 = vadd.f32 %v241, %v426
        %v438 = vadd.f32 %v242, %v371
        %v439 = vadd.f32 %v243, %v429
        %v440 = vadd.f32 %v244, %v374
        %v441 = vadd.f32 %v245, %v432
        %442 = vst [vmem:[#allocation2] sm:$0xff] %v434
        %443 = vst [vmem:[#allocation2 + $0x8] sm:$0xff] %v435
        %444 = vst [vmem:[#allocation2 + $0x10] sm:$0xff] %v436
        %445 = vst [vmem:[#allocation2 + $0x18] sm:$0xff] %v437
        %446 = vst [vmem:[#allocation2 + $0x20] sm:$0xff] %v438
        %447 = vst [vmem:[#allocation2 + $0x28] sm:$0xff] %v439
        %448 = vst [vmem:[#allocation2 + $0x30] sm:$0xff] %v440
        %449 = vst [vmem:[#allocation2 + $0x38] sm:$0xff] %v441
        // Predicated region
        $region41: #{tpu_custom_call.1} parent=27 // pred_check
          %p450 = pneg %p226
        $region42: #{tpu_custom_call.1} parent=27 // pred_check_branch
          %452 = sbr.rel (%p450) target = $region44
        $region43: #{tpu_custom_call.1} parent=27 // pred_region
          %v453 = vld [vmem:[#allocation2] sm:$0xff]
          %v454 = vld [vmem:[#allocation2 + $0x8] sm:$0xff]
          %v455 = vld [vmem:[#allocation2 + $0x10] sm:$0xff]
          %v456 = vld [vmem:[#allocation2 + $0x18] sm:$0xff]
          %v457 = vld [vmem:[#allocation2 + $0x20] sm:$0xff]
          %v458 = vld [vmem:[#allocation2 + $0x28] sm:$0xff]
          %v459 = vld [vmem:[#allocation2 + $0x30] sm:$0xff]
          %v460 = vld [vmem:[#allocation2 + $0x38] sm:$0xff]
          %461 = vst [vmem:[%s219] sm:$0xff] %v453
          %462 = vst [vmem:[%s219 + $0x8] sm:$0xff] %v454
          %463 = vst [vmem:[%s219 + $0x10] sm:$0xff] %v455
          %464 = vst [vmem:[%s219 + $0x18] sm:$0xff] %v456
          %465 = vst [vmem:[%s219 + $0x20] sm:$0xff] %v457
          %466 = vst [vmem:[%s219 + $0x28] sm:$0xff] %v458
          %467 = vst [vmem:[%s219 + $0x30] sm:$0xff] %v459
          %468 = vst [vmem:[%s219 + $0x38] sm:$0xff] %v460
        $region44: #{tpu_custom_call.1} parent=27 // pred_fallthru
          _
        %s469 = sand.u32 %s105, 1
        %s470 = scalar_lea.sflag [#allocation5], %s469
        %s471 = sand.u32 %s105, 1
        %s472 = smul.addr %s471, 64
        %s473 = scalar_lea.vmem [#allocation8], %s472
        // Predicated region
        $region45: #{tpu_custom_call.1} parent=27 // pred_check
          %p474 = pneg %p115
        $region46: #{tpu_custom_call.1} parent=27 // pred_check_branch
          %476 = sbr.rel (%p474) target = $region48
        $region47: #{tpu_custom_call.1} parent=27 // pred_region
          %s477 = smul.u32 4, %s25
          %s478 = smul.u32 2, %s26
          %480 = vsyncadd %s470, 0
          %s481 = smul.addr %s477, 6
          %s482 = sadd.s32 %s478, %s481
          %s483 = smul.addr %s482, 8
          %s484 = scalar_lea.hbm %s2, %s483
          %s485 = sshll.u32 %s473, 4
          %s486 = int_to_ptr.vmem [resolvable:$true] %s485
          %s487 = sshll.u32 %s484, 4
          %s488 = int_to_ptr.hbm [resolvable:$true] %s487
          %493 = dma.vmem_to_hbm [thread:$0]  %s486, 1024, %s488, %s470, 256, 768, 16
        $region48: #{tpu_custom_call.1} parent=27 // pred_fallthru
          _
      $region28: #{tpu_custom_call.1} parent=5 // pred_fallthru
        _
      %p494 = scmp.le.s32.totalorder 2, %s15
      // Predicated region
      $region49: #{tpu_custom_call.1} parent=5 // pred_check
        %p495 = pneg %p494
      $region50: #{tpu_custom_call.1} parent=5 // pred_check_branch
        %497 = sbr.rel (%p495) target = $region52
      $region51: #{tpu_custom_call.1} parent=5 // pred_region
        %s498 = ssub.s32 %s15, 2
        // Predicated region
        $region53: #{tpu_custom_call.1} parent=51 // pred_check
          %p499 = pneg %p121
        $region54: #{tpu_custom_call.1} parent=51 // pred_check_branch
          %501 = sbr.rel (%p499) target = $region56
        $region55: #{tpu_custom_call.1} parent=51 // pred_region
          %s502 = sand.u32 %s106, 1
          %s503 = scalar_lea.sflag [#allocation5], %s502
          %s504 = sand.u32 %s106, 1
          %s505 = smul.addr %s504, 64
          %s506 = scalar_lea.vmem [#allocation8], %s505
          %508 = dma.done %s503, 1024
        $region56: #{tpu_custom_call.1} parent=51 // pred_fallthru
          _
      $region52: #{tpu_custom_call.1} parent=5 // pred_fallthru
        _
    $region6: #{tpu_custom_call.1} parent=1 // loop_footer
      %s19 = sadd.s32 1, %s15
    $region7: #{tpu_custom_call.1} parent=1 // loop_footer_branch
      %14 = sbr.rel target = $region3
    $region8: #{tpu_custom_call.1} parent=1 // loop_exit
      _
    %509 = vsyncpa [#allocation4], 1
    %s510 = scalar_lea.sflag [#allocation4], 1
    %511 = vsyncpa %s510, 1
    %512 = vsyncpa [#allocation7], 1
    %s513 = scalar_lea.sflag [#allocation7], 1
    %514 = vsyncpa %s513, 1
    %515 = vsyncpa [#allocation5], 1
    %s516 = scalar_lea.sflag [#allocation5], 1
    %517 = vsyncpa %s516, 1

</llo_original>
